<compile_context>
chip_gen: v7x
topology: tpu7x:2x2x1
jax: 0.10.0
libtpu: 0.0.40
codegen_flags: <defaults>
</compile_context>

<pallas_src>
import functools

import jax
import jax.numpy as jnp
from jax.experimental import pallas as pl
from jax.experimental.pallas import tpu as pltpu


def _round_up(n, m):
    return ((n + m - 1) // m) * m


def _pad2d(a, rows, cols):
    r, c = a.shape
    return jnp.pad(a, ((0, rows - r), (0, cols - c)))


# ---------------------------------------------------------------------------
# Fused kernel: one MLP batch over (base + all perturbed) inputs, delta_y,
# and the full STSM loss (weight * sqrt(mean((dy + eps)^2))).
# ---------------------------------------------------------------------------
def _stsm_fused_kernel(x_ref, dx_ref, w1_ref, b1_ref, w2_ref, b2_ref,
                       y_ref, dy_ref, loss_ref,
                       *, H, B, d_out, eps, weight, compute_dtype):
    x = x_ref[...]            # (B, d_in)                 f32
    dx = dx_ref[...]          # (B + H*B, d_in)           f32, first B rows = 0
    w1 = w1_ref[...]          # (d_in, dh_pad)
    b1 = b1_ref[...]          # (1, dh_pad)
    w2 = w2_ref[...]          # (dh_pad, do_pad)
    b2 = b2_ref[...]          # (1, do_pad)

    HB = H * B
    rows = B + HB
    cd = compute_dtype

    # Replication matrix R (rows, B) with R[i, j] = (j == i mod B).  `R @ x`
    # replicates the B base rows (H+1) times along sublanes on the MXU,
    # avoiding any in-kernel sublane reshape/tile relayout.
    ri = jax.lax.broadcasted_iota(jnp.int32, (rows, B), 0)
    rj = jax.lax.broadcasted_iota(jnp.int32, (rows, B), 1)
    R = (ri % B == rj).astype(jnp.float32)

    # Single batch through the MLP: rows 0..B-1 are the base input, rows B..
    # are the H*B perturbed inputs (dx carries the perturbations).
    x_all = jnp.dot(R, x, preferred_element_type=jnp.float32) + dx   # (rows, d_in)
    h = jnp.dot(x_all.astype(cd), w1.astype(cd),
                preferred_element_type=jnp.float32) + b1
    h = jnp.maximum(h, 0.0)
    y_all = jnp.dot(h.astype(cd), w2.astype(cd),
                    preferred_element_type=jnp.float32) + b2          # (rows, do_pad)

    y_ref[...] = y_all[:B, :].astype(y_ref.dtype)    # lane-dense (128-padded) store

    # Difference matrix D (HB, rows): dy[i] = y_all[B + i] - y_all[i mod B].
    # One MXU matmul replaces replicate + VPU subtract.
    di = jax.lax.broadcasted_iota(jnp.int32, (HB, rows), 0)
    dj = jax.lax.broadcasted_iota(jnp.int32, (HB, rows), 1)
    D = ((dj == di + B).astype(jnp.float32)
         - (dj == di % B).astype(jnp.float32))
    dy = jnp.dot(D, y_all, preferred_element_type=jnp.float32)        # (HB, do_pad)

    dy_ref[...] = dy.astype(dy_ref.dtype)            # lane-dense store

    # STSM loss: weight * sqrt(mean((dy + eps)^2)) over the *real* d_out lanes
    # (padded lanes hold dy == 0 but would contribute eps^2, so mask them).
    lane = jax.lax.broadcasted_iota(jnp.int32, dy.shape, 1)
    d = dy + eps                                      # eps: static Python float
    ss = jnp.sum(jnp.where(lane < d_out, d * d, 0.0), keepdims=True)  # (1, 1)
    loss_ref[...] = weight * jnp.sqrt(ss * (1.0 / (HB * d_out)))


def stsm_forward(x, delta_x, w1p, b1p, w2p, b2p,
                 *, H, d_out, eps, weight, compute_dtype=jnp.float32):
    """Fused forward pass: returns (y, delta_ys, stsm_loss)."""
    B, d_in = x.shape
    dh_pad = w1p.shape[1]
    do_pad = w2p.shape[1]
    HB = H * B
    rows = B + HB
    # Perturbations with B leading zero rows (for the unperturbed base input).
    dx = jnp.pad(delta_x.reshape(HB, d_in), ((B, 0), (0, 0)))

    kern = functools.partial(_stsm_fused_kernel, H=H, B=B, d_out=d_out,
                             eps=float(eps), weight=float(weight),
                             compute_dtype=compute_dtype)

    y_pad, dy_pad, loss = pl.pallas_call(
        kern,
        out_shape=(
            jax.ShapeDtypeStruct((B, do_pad), jnp.float32),
            jax.ShapeDtypeStruct((HB, do_pad), jnp.float32),
            jax.ShapeDtypeStruct((1, 1), jnp.float32),
        ),
        grid_spec=pltpu.PrefetchScalarGridSpec(
            num_scalar_prefetch=0,
            grid=(1,),                          # single grid step: no per-step overhead
            in_specs=[
                pl.BlockSpec((B, d_in), lambda i: (0, 0)),
                pl.BlockSpec((rows, d_in), lambda i: (0, 0)),
                pl.BlockSpec((d_in, dh_pad), lambda i: (0, 0)),
                pl.BlockSpec((1, dh_pad), lambda i: (0, 0)),
                pl.BlockSpec((dh_pad, do_pad), lambda i: (0, 0)),
                pl.BlockSpec((1, do_pad), lambda i: (0, 0)),
            ],
            out_specs=[
                pl.BlockSpec((B, do_pad), lambda i: (0, 0)),
                pl.BlockSpec((HB, do_pad), lambda i: (0, 0)),
                pl.BlockSpec((1, 1), lambda i: (0, 0)),
            ],
        ),
        compiler_params=pltpu.CompilerParams(
            dimension_semantics=("arbitrary",)),
    )(x, dx, w1p, b1p, w2p, b2p)

    y = y_pad[:, :d_out]
    delta_ys = dy_pad[:, :d_out].reshape(H, B, d_out)
    return y, delta_ys, loss[0, 0]


# ---------------------------------------------------------------------------
# STSMWrapper: same forward semantics as the PyTorch module.
# ---------------------------------------------------------------------------
class STSMWrapper:
    def __init__(self, params, H=7, Q=0.01, weight=1.0, eps=1e-8,
                 compute_dtype=jnp.float32):
        w1, b1, w2, b2 = params
        d_in, d_hid = w1.shape
        d_out = w2.shape[1]
        # Pad feature dims to multiples of 128 ONCE, outside the kernel
        # (lane-dense stores; MXU-aligned N dims).  Zero padding is exact:
        # relu(0) = 0 and zero rows of w2 contribute nothing.
        dh_pad = _round_up(d_hid, 128)
        do_pad = _round_up(d_out, 128)
        self._params_padded = (
            _pad2d(w1, d_in, dh_pad),
            _pad2d(b1.reshape(1, -1), 1, dh_pad),
            _pad2d(w2, dh_pad, do_pad),
            _pad2d(b2.reshape(1, -1), 1, do_pad),
        )
        self.H = H
        self.Q = Q
        self.weight = weight
        self.eps = eps
        self.d_out = d_out
        self.STSMLoss = None
        self.delta_ys = None
        self._fwd = jax.jit(functools.partial(
            stsm_forward, H=H, d_out=d_out, eps=eps, weight=weight,
            compute_dtype=compute_dtype))

    def __call__(self, x, key):
        B, d_in = x.shape
        # torch.rand(H, *x.shape) * 2Q - Q  ->  uniform in [-Q, Q)
        # TODO(synk): noise is generated with jax.random (not torch.rand), so
        # the random stream differs from PyTorch but the distribution matches.
        delta_x = (jax.random.uniform(key, (self.H, B, d_in), jnp.float32)
                   * (2.0 * self.Q) - self.Q)
        y, delta_ys, loss = self._fwd(x, delta_x, *self._params_padded)
        # PyTorch keeps a Python list of per-h tensors; a stacked array carries
        # the same values.
        self.delta_ys = delta_ys
        self.STSMLoss = loss
        return y


# ---------------------------------------------------------------------------
# Pure-JAX reference for verification.
# ---------------------------------------------------------------------------
def _ref_model(x, w1, b1, w2, b2):
    h = jnp.maximum(
        jnp.dot(x, w1, precision=jax.lax.Precision.HIGHEST) + b1, 0.0)
    return jnp.dot(h, w2, precision=jax.lax.Precision.HIGHEST) + b2


if __name__ == "__main__":
    B, D_IN, D_HID, D_OUT = 2, 32, 32, 16
    H, Q, WEIGHT, EPS = 7, 0.01, 1.0, 1e-8

    key = jax.random.PRNGKey(0)
    k_x, k_w1, k_b1, k_w2, k_b2, k_noise = jax.random.split(key, 6)
    x = jax.random.normal(k_x, (B, D_IN), jnp.float32)
    w1 = 0.1 * jax.random.normal(k_w1, (D_IN, D_HID), jnp.float32)
    b1 = 0.01 * jax.random.normal(k_b1, (1, D_HID), jnp.float32)
    w2 = 0.1 * jax.random.normal(k_w2, (D_HID, D_OUT), jnp.float32)
    b2 = 0.01 * jax.random.normal(k_b2, (1, D_OUT), jnp.float32)

    wrapper = STSMWrapper((w1, b1, w2, b2), H=H, Q=Q, weight=WEIGHT, eps=EPS)
    y = wrapper(x, k_noise)
    jax.block_until_ready(y)
    jax.block_until_ready(wrapper.STSMLoss)

    # --- reference check (same noise) ---
    delta_x = (jax.random.uniform(k_noise, (H, B, D_IN), jnp.float32)
               * (2.0 * Q) - Q)
    y_ref = _ref_model(x, w1, b1, w2, b2)
    yp_ref = _ref_model((x[None] + delta_x).reshape(H * B, D_IN),
                        w1, b1, w2, b2).reshape(H, B, D_OUT)
    dys_ref = yp_ref - y_ref[None]
    stsm_ref = WEIGHT * jnp.sqrt(jnp.mean(jnp.square(yp_ref - y_ref[None] + EPS)))

    assert jnp.allclose(y, y_ref, rtol=1e-4, atol=1e-4), "y mismatch"
    assert jnp.allclose(wrapper.delta_ys, dys_ref, rtol=1e-3, atol=1e-5), \
        "delta_ys mismatch"
    assert jnp.allclose(wrapper.STSMLoss, stsm_ref, rtol=1e-2, atol=1e-7), \
        "STSM loss mismatch"

    print("KERNEL_OK")
</pallas_src>

<mosaic_0001>
module attributes {stable_mosaic.version = 11 : i64} {
  func.func @_stsm_fused_kernel(%arg0: i32, %arg1: memref<2x32xf32, #tpu.memory_space<vmem>>, %arg2: memref<16x32xf32, #tpu.memory_space<vmem>>, %arg3: memref<32x128xf32, #tpu.memory_space<vmem>>, %arg4: memref<1x128xf32, #tpu.memory_space<vmem>>, %arg5: memref<128x128xf32, #tpu.memory_space<vmem>>, %arg6: memref<1x128xf32, #tpu.memory_space<vmem>>, %arg7: memref<2x128xf32, #tpu.memory_space<vmem>>, %arg8: memref<14x128xf32, #tpu.memory_space<vmem>>, %arg9: memref<1x1xf32, #tpu.memory_space<vmem>>) attributes {dimension_semantics = [#tpu.dimension_semantics<arbitrary>], iteration_bounds = array<i64: 1>, scalar_prefetch = 0 : i64, scratch_operands = 0 : i64, tpu.core_type = #tpu.core_type<tc>, window_params = [{pipeline_mode = #tpu.pipeline_mode<synchronous>, transform_indices = @transform_0, window_bounds = array<i64: 2, 32>}, {pipeline_mode = #tpu.pipeline_mode<synchronous>, transform_indices = @transform_1, window_bounds = array<i64: 16, 32>}, {pipeline_mode = #tpu.pipeline_mode<synchronous>, transform_indices = @transform_2, window_bounds = array<i64: 32, 128>}, {pipeline_mode = #tpu.pipeline_mode<synchronous>, transform_indices = @transform_3, window_bounds = array<i64: 1, 128>}, {pipeline_mode = #tpu.pipeline_mode<synchronous>, transform_indices = @transform_4, window_bounds = array<i64: 128, 128>}, {pipeline_mode = #tpu.pipeline_mode<synchronous>, transform_indices = @transform_5, window_bounds = array<i64: 1, 128>}, {pipeline_mode = #tpu.pipeline_mode<synchronous>, transform_indices = @transform_6, window_bounds = array<i64: 2, 128>}, {pipeline_mode = #tpu.pipeline_mode<synchronous>, transform_indices = @transform_7, window_bounds = array<i64: 14, 128>}, {pipeline_mode = #tpu.pipeline_mode<synchronous>, transform_indices = @transform_8, window_bounds = array<i64: 1, 1>}]} {
    %c0 = arith.constant 0 : index
    %c0_0 = arith.constant 0 : index
    %0 = vector.load %arg1[%c0, %c0_0] : memref<2x32xf32, #tpu.memory_space<vmem>>, vector<2x32xf32>
    %c0_1 = arith.constant 0 : index
    %c0_2 = arith.constant 0 : index
    %1 = vector.load %arg2[%c0_1, %c0_2] : memref<16x32xf32, #tpu.memory_space<vmem>>, vector<16x32xf32>
    %c0_3 = arith.constant 0 : index
    %c0_4 = arith.constant 0 : index
    %2 = vector.load %arg3[%c0_3, %c0_4] : memref<32x128xf32, #tpu.memory_space<vmem>>, vector<32x128xf32>
    %c0_5 = arith.constant 0 : index
    %c0_6 = arith.constant 0 : index
    %3 = vector.load %arg4[%c0_5, %c0_6] : memref<1x128xf32, #tpu.memory_space<vmem>>, vector<1x128xf32>
    %c0_7 = arith.constant 0 : index
    %c0_8 = arith.constant 0 : index
    %4 = vector.load %arg5[%c0_7, %c0_8] : memref<128x128xf32, #tpu.memory_space<vmem>>, vector<128x128xf32>
    %c0_9 = arith.constant 0 : index
    %c0_10 = arith.constant 0 : index
    %5 = vector.load %arg6[%c0_9, %c0_10] : memref<1x128xf32, #tpu.memory_space<vmem>>, vector<1x128xf32>
    %6 = tpu.iota {dimensions = array<i32: 0>} : vector<16x2xi32>
    %7 = tpu.iota {dimensions = array<i32: 1>} : vector<16x2xi32>
    %c2_i32 = arith.constant 2 : i32
    %c0_i32 = arith.constant 0 : i32
    %8 = arith.cmpi eq, %c2_i32, %c0_i32 : i32
    %c1_i32 = arith.constant 1 : i32
    %9 = arith.select %8, %c1_i32, %c2_i32 : i32
    %10 = vector.broadcast %9 : i32 to vector<16x2xi32>
    %11 = arith.remsi %6, %10 : vector<16x2xi32>
    %c0_i32_11 = arith.constant 0 : i32
    %12 = vector.broadcast %c0_i32_11 : i32 to vector<16x2xi32>
    %13 = arith.cmpi ne, %11, %12 : vector<16x2xi32>
    %c0_i32_12 = arith.constant 0 : i32
    %14 = vector.broadcast %c0_i32_12 : i32 to vector<16x2xi32>
    %15 = arith.cmpi slt, %11, %14 : vector<16x2xi32>
    %c0_i32_13 = arith.constant 0 : i32
    %16 = arith.cmpi slt, %9, %c0_i32_13 : i32
    %17 = vector.broadcast %16 : i1 to vector<16x2xi1>
    %18 = vector.broadcast %17 : vector<16x2xi1> to vector<16x2xi1>
    %19 = arith.xori %15, %18 : vector<16x2xi1>
    %20 = arith.andi %19, %13 : vector<16x2xi1>
    %21 = vector.broadcast %9 : i32 to vector<16x2xi32>
    %22 = arith.addi %11, %21 : vector<16x2xi32>
    %23 = arith.select %20, %22, %11 : vector<16x2xi1>, vector<16x2xi32>
    %24 = arith.cmpi eq, %23, %7 : vector<16x2xi32>
    %25 = arith.extui %24 : vector<16x2xi1> to vector<16x2xi32>
    %26 = arith.sitofp %25 : vector<16x2xi32> to vector<16x2xf32>
    %cst = arith.constant dense<0.000000e+00> : vector<16x32xf32>
    %27 = tpu.matmul %26, %0, %cst {dimension_numbers = #tpu.dot_dimension_numbers<[1], [0], [0], [1], [0, 0, 1, 1], [], []>} : vector<16x2xf32>, vector<2x32xf32>, vector<16x32xf32> -> vector<16x32xf32>
    %28 = arith.addf %27, %1 : vector<16x32xf32>
    %cst_14 = arith.constant dense<0.000000e+00> : vector<16x128xf32>
    %29 = tpu.matmul %28, %2, %cst_14 {dimension_numbers = #tpu.dot_dimension_numbers<[1], [0], [0], [1], [0, 0, 1, 1], [], []>} : vector<16x32xf32>, vector<32x128xf32>, vector<16x128xf32> -> vector<16x128xf32>
    %30 = vector.broadcast %3 : vector<1x128xf32> to vector<16x128xf32>
    %31 = arith.addf %29, %30 : vector<16x128xf32>
    %cst_15 = arith.constant 0.000000e+00 : f32
    %32 = vector.broadcast %cst_15 : f32 to vector<16x128xf32>
    %33 = arith.maximumf %31, %32 : vector<16x128xf32>
    %cst_16 = arith.constant dense<0.000000e+00> : vector<16x128xf32>
    %34 = tpu.matmul %33, %4, %cst_16 {dimension_numbers = #tpu.dot_dimension_numbers<[1], [0], [0], [1], [0, 0, 1, 1], [], []>} : vector<16x128xf32>, vector<128x128xf32>, vector<16x128xf32> -> vector<16x128xf32>
    %35 = vector.broadcast %5 : vector<1x128xf32> to vector<16x128xf32>
    %36 = arith.addf %34, %35 : vector<16x128xf32>
    %37 = vector.extract_strided_slice %36 {offsets = [0, 0], sizes = [2, 128], strides = [1, 1]} : vector<16x128xf32> to vector<2x128xf32>
    %c0_17 = arith.constant 0 : index
    %c0_18 = arith.constant 0 : index
    %38 = vector.load %arg7[%c0_17, %c0_18] : memref<2x128xf32, #tpu.memory_space<vmem>>, vector<2x128xf32>
    tpu.vector_store %arg7[%c0_17, %c0_18], %37 {strides = array<i32>} : memref<2x128xf32, #tpu.memory_space<vmem>>, vector<2x128xf32>,
    %39 = tpu.iota {dimensions = array<i32: 0>} : vector<14x16xi32>
    %40 = tpu.iota {dimensions = array<i32: 1>} : vector<14x16xi32>
    %c2_i32_19 = arith.constant 2 : i32
    %41 = vector.broadcast %c2_i32_19 : i32 to vector<14x16xi32>
    %42 = arith.addi %39, %41 : vector<14x16xi32>
    %43 = arith.cmpi eq, %40, %42 : vector<14x16xi32>
    %44 = arith.extui %43 : vector<14x16xi1> to vector<14x16xi32>
    %45 = arith.sitofp %44 : vector<14x16xi32> to vector<14x16xf32>
    %c2_i32_20 = arith.constant 2 : i32
    %c0_i32_21 = arith.constant 0 : i32
    %46 = arith.cmpi eq, %c2_i32_20, %c0_i32_21 : i32
    %c1_i32_22 = arith.constant 1 : i32
    %47 = arith.select %46, %c1_i32_22, %c2_i32_20 : i32
    %48 = vector.broadcast %47 : i32 to vector<14x16xi32>
    %49 = arith.remsi %39, %48 : vector<14x16xi32>
    %c0_i32_23 = arith.constant 0 : i32
    %50 = vector.broadcast %c0_i32_23 : i32 to vector<14x16xi32>
    %51 = arith.cmpi ne, %49, %50 : vector<14x16xi32>
    %c0_i32_24 = arith.constant 0 : i32
    %52 = vector.broadcast %c0_i32_24 : i32 to vector<14x16xi32>
    %53 = arith.cmpi slt, %49, %52 : vector<14x16xi32>
    %c0_i32_25 = arith.constant 0 : i32
    %54 = arith.cmpi slt, %47, %c0_i32_25 : i32
    %55 = vector.broadcast %54 : i1 to vector<14x16xi1>
    %56 = vector.broadcast %55 : vector<14x16xi1> to vector<14x16xi1>
    %57 = arith.xori %53, %56 : vector<14x16xi1>
    %58 = arith.andi %57, %51 : vector<14x16xi1>
    %59 = vector.broadcast %47 : i32 to vector<14x16xi32>
    %60 = arith.addi %49, %59 : vector<14x16xi32>
    %61 = arith.select %58, %60, %49 : vector<14x16xi1>, vector<14x16xi32>
    %62 = arith.cmpi eq, %40, %61 : vector<14x16xi32>
    %63 = arith.extui %62 : vector<14x16xi1> to vector<14x16xi32>
    %64 = arith.sitofp %63 : vector<14x16xi32> to vector<14x16xf32>
    %65 = arith.subf %45, %64 : vector<14x16xf32>
    %cst_26 = arith.constant dense<0.000000e+00> : vector<14x128xf32>
    %66 = tpu.matmul %65, %36, %cst_26 {dimension_numbers = #tpu.dot_dimension_numbers<[1], [0], [0], [1], [0, 0, 1, 1], [], []>} : vector<14x16xf32>, vector<16x128xf32>, vector<14x128xf32> -> vector<14x128xf32>
    %c0_27 = arith.constant 0 : index
    %c0_28 = arith.constant 0 : index
    %67 = vector.load %arg8[%c0_27, %c0_28] : memref<14x128xf32, #tpu.memory_space<vmem>>, vector<14x128xf32>
    tpu.vector_store %arg8[%c0_27, %c0_28], %66 {strides = array<i32>} : memref<14x128xf32, #tpu.memory_space<vmem>>, vector<14x128xf32>,
    %68 = tpu.iota {dimensions = array<i32: 1>} : vector<14x128xi32>
    %cst_29 = arith.constant 9.99999993E-9 : f32
    %69 = vector.broadcast %cst_29 : f32 to vector<14x128xf32>
    %70 = arith.addf %66, %69 : vector<14x128xf32>
    %c16_i32 = arith.constant 16 : i32
    %71 = vector.broadcast %c16_i32 : i32 to vector<14x128xi32>
    %72 = arith.cmpi slt, %68, %71 : vector<14x128xi32>
    %73 = arith.mulf %70, %70 : vector<14x128xf32>
    %cst_30 = arith.constant 0.000000e+00 : f32
    %74 = vector.broadcast %cst_30 : f32 to vector<14x128xf32>
    %75 = arith.select %72, %73, %74 : vector<14x128xi1>, vector<14x128xf32>
    %76 = vector.shape_cast %75 : vector<14x128xf32> to vector<1x14x128xf32>
    %cst_31 = arith.constant dense<0.000000e+00> : vector<1xf32>
    %77 = vector.multi_reduction <add>, %76, %cst_31 [1, 2] : vector<1x14x128xf32> to vector<1xf32>
    %78 = vector.shape_cast %77 : vector<1xf32> to vector<1x1x1xf32>
    %79 = vector.extract %78[0, 0, 0] : f32 from vector<1x1x1xf32>
    %80 = vector.broadcast %79 : f32 to vector<1x1xf32>
    %cst_32 = arith.constant 0.00446428591 : f32
    %81 = vector.broadcast %cst_32 : f32 to vector<1x1xf32>
    %82 = arith.mulf %80, %81 : vector<1x1xf32>
    %83 = math.sqrt %82 : vector<1x1xf32>
    %cst_33 = arith.constant 1.000000e+00 : f32
    %84 = vector.broadcast %cst_33 : f32 to vector<1x1xf32>
    %85 = arith.mulf %84, %83 : vector<1x1xf32>
    %c0_34 = arith.constant 0 : index
    %c0_35 = arith.constant 0 : index
    %86 = vector.load %arg9[%c0_34, %c0_35] : memref<1x1xf32, #tpu.memory_space<vmem>>, vector<1x1xf32>
    tpu.vector_store %arg9[%c0_34, %c0_35], %85 {strides = array<i32>} : memref<1x1xf32, #tpu.memory_space<vmem>>, vector<1x1xf32>,
    return
  }
  func.func @transform_0(%arg0: i32) -> (i32, i32) {
    %c0_i32 = arith.constant 0 : i32
    %c0_i32_0 = arith.constant 0 : i32
    %c0_i32_1 = arith.constant 0 : i32
    return %c0_i32, %c0_i32_0 : i32, i32
  }
  func.func @transform_1(%arg0: i32) -> (i32, i32) {
    %c0_i32 = arith.constant 0 : i32
    %c0_i32_0 = arith.constant 0 : i32
    %c0_i32_1 = arith.constant 0 : i32
    return %c0_i32, %c0_i32_0 : i32, i32
  }
  func.func @transform_2(%arg0: i32) -> (i32, i32) {
    %c0_i32 = arith.constant 0 : i32
    %c0_i32_0 = arith.constant 0 : i32
    %c0_i32_1 = arith.constant 0 : i32
    return %c0_i32, %c0_i32_0 : i32, i32
  }
  func.func @transform_3(%arg0: i32) -> (i32, i32) {
    %c0_i32 = arith.constant 0 : i32
    %c0_i32_0 = arith.constant 0 : i32
    %c0_i32_1 = arith.constant 0 : i32
    return %c0_i32, %c0_i32_0 : i32, i32
  }
  func.func @transform_4(%arg0: i32) -> (i32, i32) {
    %c0_i32 = arith.constant 0 : i32
    %c0_i32_0 = arith.constant 0 : i32
    %c0_i32_1 = arith.constant 0 : i32
    return %c0_i32, %c0_i32_0 : i32, i32
  }
  func.func @transform_5(%arg0: i32) -> (i32, i32) {
    %c0_i32 = arith.constant 0 : i32
    %c0_i32_0 = arith.constant 0 : i32
    %c0_i32_1 = arith.constant 0 : i32
    return %c0_i32, %c0_i32_0 : i32, i32
  }
  func.func @transform_6(%arg0: i32) -> (i32, i32) {
    %c0_i32 = arith.constant 0 : i32
    %c0_i32_0 = arith.constant 0 : i32
    %c0_i32_1 = arith.constant 0 : i32
    return %c0_i32, %c0_i32_0 : i32, i32
  }
  func.func @transform_7(%arg0: i32) -> (i32, i32) {
    %c0_i32 = arith.constant 0 : i32
    %c0_i32_0 = arith.constant 0 : i32
    %c0_i32_1 = arith.constant 0 : i32
    return %c0_i32, %c0_i32_0 : i32, i32
  }
  func.func @transform_8(%arg0: i32) -> (i32, i32) {
    %c0_i32 = arith.constant 0 : i32
    %c0_i32_0 = arith.constant 0 : i32
    %c0_i32_1 = arith.constant 0 : i32
    return %c0_i32, %c0_i32_0 : i32, i32
  }
}

</mosaic_0001>

<llo_original>
// kernel: stsm_forward.1
$region0: #{stsm_forward.1}
  #allocation0 [shape = 'u32[]', space=smem, size = 0x4, offset = 0x4, fixed_abs, tag = 'smem constant byte address 0x4 - core index']
  #allocation1 [shape = 'u32[144,128]{1,0:T(1,128)}', space=vmem, size = 0x12000, scoped, tag = 'internal scratch']
  %s0 = inlined_call_operand.vmem [shape: f32[2,32], index: 0, kind: input, shape index: {}]
  %s1 = inlined_call_operand.vmem [shape: f32[16,32], index: 1, kind: input, shape index: {}]
  %s2 = inlined_call_operand.vmem [shape: f32[32,128], index: 2, kind: input, shape index: {}]
  %s3 = inlined_call_operand.vmem [shape: f32[1,128], index: 3, kind: input, shape index: {}]
  %s4 = inlined_call_operand.hbm [shape: f32[128,128], index: 4, kind: input, shape index: {}]
  %s5 = inlined_call_operand.vmem [shape: f32[1,128], index: 5, kind: input, shape index: {}]
  %s6 = inlined_call_operand.hbm [shape: f32[2,128], index: 6, kind: output, shape index: {0}]
  %s7 = inlined_call_operand.vmem [shape: f32[14,128], index: 7, kind: output, shape index: {1}]
  %s8 = inlined_call_operand.hbm [shape: f32[1,1], index: 8, kind: output, shape index: {2}]
  %9 = xla_tuple %s6, %s7, %s8
  %s10 = sld [smem:[#allocation0]]
  $region54: #{stsm_forward.1} parent=0
    _
  %s12 = ssub.s32 1, %s10
  %s13 = scalar_select 0, %s12, %s10
  $region1: #{stsm_forward.1} parent=0
    #allocation2 [shape = 'u8[65536]{0}', space=vmem, size = 0x10000, scoped, tag = 'input window, operand 4, single buffered']
    #allocation3 [shape = 's32[1]{0}', space=sflag, size = 0x4, scoped, tag = 'scoped memory for stsm_forward.1']
    #allocation4 [shape = 's32[1]{0}', space=sflag, size = 0x4, scoped, tag = 'scoped memory for stsm_forward.1']
    #allocation5 [shape = 'u8[1024]{0}', space=vmem, size = 0x400, scoped, tag = 'output window, operand 0, single buffered']
    #allocation6 [shape = 'u8[512]{0}', space=vmem, size = 0x400, scoped, tag = 'output window, operand 2, single buffered']
    #allocation7 [shape = 's32[1]{0}', space=sflag, size = 0x4, scoped, tag = 'scoped memory for stsm_forward.1']
    %14 = vsyncpa [#allocation3], 0
    %15 = vsyncpa [#allocation4], 0
    %16 = vsyncpa [#allocation7], 0
    // Predicated region
    $region2: #{stsm_forward.1} parent=1 // pred_check
      _
    $region3: #{stsm_forward.1} parent=1 // pred_check_branch
      %18 = sbr.rel (0) target = $region5
    $region4: #{stsm_forward.1} parent=1 // pred_region
      _
    $region5: #{stsm_forward.1} parent=1 // pred_fallthru
      _
    // Predicated region
    $region6: #{stsm_forward.1} parent=1 // pred_check
      _
    $region7: #{stsm_forward.1} parent=1 // pred_check_branch
      %20 = sbr.rel (0) target = $region9
    $region8: #{stsm_forward.1} parent=1 // pred_region
      _
    $region9: #{stsm_forward.1} parent=1 // pred_fallthru
      _
    // Predicated region
    $region10: #{stsm_forward.1} parent=1 // pred_check
      _
    $region11: #{stsm_forward.1} parent=1 // pred_check_branch
      %22 = sbr.rel (0) target = $region13
    $region12: #{stsm_forward.1} parent=1 // pred_region
      _
    $region13: #{stsm_forward.1} parent=1 // pred_fallthru
      _
    // Predicated region
    $region14: #{stsm_forward.1} parent=1 // pred_check
      _
    $region15: #{stsm_forward.1} parent=1 // pred_check_branch
      %24 = sbr.rel (0) target = $region17
    $region16: #{stsm_forward.1} parent=1 // pred_region
      _
    $region17: #{stsm_forward.1} parent=1 // pred_fallthru
      _
    // Predicated region
    $region18: #{stsm_forward.1} parent=1 // pred_check
      _
    $region19: #{stsm_forward.1} parent=1 // pred_check_branch
      %26 = sbr.rel (0) target = $region21
    $region20: #{stsm_forward.1} parent=1 // pred_region
      %s28 = ssub.s32 2048, 2048
      %29 = vsyncadd [#allocation3], %s28
      %s30 = sshll.u32 [#allocation2], 4
      %s31 = int_to_ptr.vmem [resolvable:$true] %s30
      %36 = dma.hbm_to_vmem [thread:$0]  %s4, 2048, %s31, [#allocation3], 128, 128, 8
    $region21: #{stsm_forward.1} parent=1 // pred_fallthru
      _
    // Predicated region
    $region22: #{stsm_forward.1} parent=1 // pred_check
      _
    $region23: #{stsm_forward.1} parent=1 // pred_check_branch
      %38 = sbr.rel (0) target = $region25
    $region24: #{stsm_forward.1} parent=1 // pred_region
      _
    $region25: #{stsm_forward.1} parent=1 // pred_fallthru
      _
    // Predicated region
    $region26: #{stsm_forward.1} parent=1 // pred_check
      _
    $region27: #{stsm_forward.1} parent=1 // pred_check_branch
      %40 = sbr.rel (0) target = $region29
    $region28: #{stsm_forward.1} parent=1 // pred_region
      %41 = dma.done [#allocation3], 2048
    $region29: #{stsm_forward.1} parent=1 // pred_fallthru
      _
    %v42 = vld [vmem:[%s0] sm:$0x3]
    %v43 = vld [vmem:[%s1] sm:$0xff]
    %v44 = vld [vmem:[%s1 + $0x8] sm:$0xff]
    %v45 = vld [vmem:[%s2] sm:$0xff]
    %v46 = vld [vmem:[%s2 + $0x8] sm:$0xff]
    %v47 = vld [vmem:[%s2 + $0x10] sm:$0xff]
    %v48 = vld [vmem:[%s2 + $0x18] sm:$0xff]
    %v49 = vld [vmem:[%s3] sm:$0x1]
    %v50 = vld [vmem:[#allocation2] sm:$0xff]
    %v51 = vld [vmem:[#allocation2 + $0x8] sm:$0xff]
    %v52 = vld [vmem:[#allocation2 + $0x10] sm:$0xff]
    %v53 = vld [vmem:[#allocation2 + $0x18] sm:$0xff]
    %v54 = vld [vmem:[#allocation2 + $0x20] sm:$0xff]
    %v55 = vld [vmem:[#allocation2 + $0x28] sm:$0xff]
    %v56 = vld [vmem:[#allocation2 + $0x30] sm:$0xff]
    %v57 = vld [vmem:[#allocation2 + $0x38] sm:$0xff]
    %v58 = vld [vmem:[#allocation2 + $0x40] sm:$0xff]
    %v59 = vld [vmem:[#allocation2 + $0x48] sm:$0xff]
    %v60 = vld [vmem:[#allocation2 + $0x50] sm:$0xff]
    %v61 = vld [vmem:[#allocation2 + $0x58] sm:$0xff]
    %v62 = vld [vmem:[#allocation2 + $0x60] sm:$0xff]
    %v63 = vld [vmem:[#allocation2 + $0x68] sm:$0xff]
    %v64 = vld [vmem:[#allocation2 + $0x70] sm:$0xff]
    %v65 = vld [vmem:[#allocation2 + $0x78] sm:$0xff]
    %v66 = vld [vmem:[%s5] sm:$0x1]
    %v67 = vlaneseq
    %v68 = vshrl.u32 %v67, 7
    %v69 = vadd.s32 %v68, 8
    %v70 = vlaneseq
    %v71 = vand.u32 %v70, 127
    %vm72 = vcmp.lt.s32.totalorder %v68, 0
    %v73 = vsub.s32 0, %v68
    %v74 = vsel %vm72, %v73, %v68
    %v75 = vshrl.u32 %v74, 1
    %v76 = vand.u32 %v74, 1
    %v77 = vsub.s32 0, %v76
    %v78 = vsel %vm72, %v77, %v76
    %vm79 = vcmp.lt.s32.totalorder %v69, 0
    %v80 = vsub.s32 0, %v69
    %v81 = vsel %vm79, %v80, %v69
    %v82 = vshrl.u32 %v81, 1
    %v83 = vand.u32 %v81, 1
    %v84 = vsub.s32 0, %v83
    %v85 = vsel %vm79, %v84, %v83
    %vm86 = vcmp.ne.s32.totalorder %v78, 0
    %vm87 = vcmp.ne.s32.totalorder %v85, 0
    %vm88 = vcmp.lt.s32.totalorder %v78, 0
    %vm89 = vcmp.lt.s32.totalorder %v85, 0
    %vm90 = vmand %vm88, %vm86
    %vm91 = vmand %vm89, %vm87
    %v92 = vadd.s32 %v78, 2
    %v93 = vadd.s32 %v85, 2
    %v94 = vsel %vm90, %v92, %v78
    %v95 = vsel %vm91, %v93, %v85
    %vm96 = vcmp.eq.s32.totalorder %v94, %v71
    %vm97 = vcmp.eq.s32.totalorder %v95, %v71
    %v98 = vsel %vm96, 1, 0
    %v99 = vsel %vm97, 1, 0
    %v100 = vcvt.s32.f32 %v98
    %v101 = vcvt.s32.f32 %v99
    %vm102 = vcmask 15360
    %v104 = vsel %vm102, %v100, 0
    %v107 = vsel %vm102, %v101, 0
    %vm109 = vcmask 1041408
    %v111 = vsel %vm109, %v42, 0
    %113 = vmatprep.subr.mxu0 0.0
    %114 = vmatpush1.msra.mxu0 %v111
    %115 = vmatprep.subr.mxu0 0.0
    %116 = vmatpush1.msra.mxu0 0.0
    %117 = vmatprep.subr.mxu0 0.0
    %118 = vmatpush1.msra.mxu0 0.0
    %119 = vmatprep.subr.mxu0 0.0
    %120 = vmatpush1.msra.mxu0 0.0
    %121 = vmatprep.subr.mxu0 0.0
    %122 = vmatpush1.msra.mxu0 0.0
    %123 = vmatprep.subr.mxu0 0.0
    %124 = vmatpush1.msra.mxu0 0.0
    %125 = vmatprep.subr.mxu0 0.0
    %126 = vmatpush1.msra.mxu0 0.0
    %127 = vmatprep.subr.mxu0 0.0
    %128 = vmatpush1.msra.mxu0 0.0
    %129 = vmatprep.subr.mxu0 0.0
    %130 = vmatpush1.msra.mxu0 0.0
    %131 = vmatprep.subr.mxu0 0.0
    %132 = vmatpush1.msra.mxu0 0.0
    %133 = vmatprep.subr.mxu0 0.0
    %134 = vmatpush1.msra.mxu0 0.0
    %135 = vmatprep.subr.mxu0 0.0
    %136 = vmatpush1.msra.mxu0 0.0
    %137 = vmatprep.subr.mxu0 0.0
    %138 = vmatpush1.msra.mxu0 0.0
    %139 = vmatprep.subr.mxu0 0.0
    %140 = vmatpush1.msra.mxu0 0.0
    %141 = vmatprep.subr.mxu0 0.0
    %142 = vmatpush1.msra.mxu0 0.0
    %143 = vmatprep.subr.mxu0 0.0
    %144 = vmatpush1.msra.mxu0 0.0
    %145 = vmatprep.subr.mxu0 0.0
    %146 = vmatpush1.msra.mxu0 0.0
    %147 = vmatprep.subr.mxu0 0.0
    %148 = vmatpush1.msra.mxu0 0.0
    %149 = vmatprep.subr.mxu0 0.0
    %150 = vmatpush1.msra.mxu0 0.0
    %151 = vmatprep.subr.mxu0 0.0
    %152 = vmatpush1.msra.mxu0 0.0
    %153 = vmatprep.subr.mxu0 0.0
    %154 = vmatpush1.msra.mxu0 0.0
    %155 = vmatprep.subr.mxu0 0.0
    %156 = vmatpush1.msra.mxu0 0.0
    %157 = vmatprep.subr.mxu0 0.0
    %158 = vmatpush1.msra.mxu0 0.0
    %159 = vmatprep.subr.mxu0 0.0
    %160 = vmatpush1.msra.mxu0 0.0
    %161 = vmatprep.subr.mxu0 0.0
    %162 = vmatpush1.msra.mxu0 0.0
    %163 = vmatprep.subr.mxu0 0.0
    %164 = vmatpush1.msra.mxu0 0.0
    %165 = vmatprep.subr.mxu0 0.0
    %166 = vmatpush1.msra.mxu0 0.0
    %167 = vmatprep.subr.mxu0 0.0
    %168 = vmatpush1.msra.mxu0 0.0
    %169 = vmatprep.subr.mxu0 0.0
    %170 = vmatpush1.msra.mxu0 0.0
    %171 = vmatprep.subr.mxu0 0.0
    %172 = vmatpush1.msra.mxu0 0.0
    %173 = vmatprep.subr.mxu0 0.0
    %174 = vmatpush1.msra.mxu0 0.0
    %175 = vmatprep.subr.mxu0 0.0
    %176 = vmatpush1.msra.mxu0 0.0
    %177 = vmatprep.mubr.f32.mxu0 0.0
    %178 = vmatmul.mubr.f32.gmra.mrb[0].mxu0 %v104
    %v179 = vpop.f32.mrb[0].mxu0
    %v180 = vadd.f32 %v43, %v179
    %v181 = vpop.f32.mrb[0].mxu0
    %182 = vmatprep.mubr.f32.mxu0 0.0
    %183 = vmatmul.mubr.f32.gmra.mrb[0].mxu0 %v107
    %v184 = vpop.f32.mrb[0].mxu0
    %v185 = vadd.f32 %v44, %v184
    %v186 = vpop.f32.mrb[0].mxu0
    %187 = vdwg.mxu0
    %v189 = vlaneseq
    %v190 = vshrl.u32 %v189, 7
    %v191 = vsub.s32 0, %v190
    %v192 = vrot.slane %v49, %v191
    %vm194 = vcmask 261120
    %v196 = vsel %vm194, %v180, 0
    %v199 = vsel %vm194, %v185, 0
    %201 = vmatprep.subr.mxu0 0.0
    %202 = vmatpush1.msra.mxu0 %v45
    %203 = vmatprep.subr.mxu0 0.0
    %204 = vmatpush1.msra.mxu0 %v46
    %205 = vmatprep.subr.mxu0 0.0
    %206 = vmatpush1.msra.mxu0 %v47
    %207 = vmatprep.subr.mxu0 0.0
    %208 = vmatpush1.msra.mxu0 %v48
    %209 = vmatprep.subr.mxu0 0.0
    %210 = vmatpush1.msra.mxu0 0.0
    %211 = vmatprep.subr.mxu0 0.0
    %212 = vmatpush1.msra.mxu0 0.0
    %213 = vmatprep.subr.mxu0 0.0
    %214 = vmatpush1.msra.mxu0 0.0
    %215 = vmatprep.subr.mxu0 0.0
    %216 = vmatpush1.msra.mxu0 0.0
    %217 = vmatprep.subr.mxu0 0.0
    %218 = vmatpush1.msra.mxu0 0.0
    %219 = vmatprep.subr.mxu0 0.0
    %220 = vmatpush1.msra.mxu0 0.0
    %221 = vmatprep.subr.mxu0 0.0
    %222 = vmatpush1.msra.mxu0 0.0
    %223 = vmatprep.subr.mxu0 0.0
    %224 = vmatpush1.msra.mxu0 0.0
    %225 = vmatprep.subr.mxu0 0.0
    %226 = vmatpush1.msra.mxu0 0.0
    %227 = vmatprep.subr.mxu0 0.0
    %228 = vmatpush1.msra.mxu0 0.0
    %229 = vmatprep.subr.mxu0 0.0
    %230 = vmatpush1.msra.mxu0 0.0
    %231 = vmatprep.subr.mxu0 0.0
    %232 = vmatpush1.msra.mxu0 0.0
    %233 = vmatprep.subr.mxu0 0.0
    %234 = vmatpush1.msra.mxu0 0.0
    %235 = vmatprep.subr.mxu0 0.0
    %236 = vmatpush1.msra.mxu0 0.0
    %237 = vmatprep.subr.mxu0 0.0
    %238 = vmatpush1.msra.mxu0 0.0
    %239 = vmatprep.subr.mxu0 0.0
    %240 = vmatpush1.msra.mxu0 0.0
    %241 = vmatprep.subr.mxu0 0.0
    %242 = vmatpush1.msra.mxu0 0.0
    %243 = vmatprep.subr.mxu0 0.0
    %244 = vmatpush1.msra.mxu0 0.0
    %245 = vmatprep.subr.mxu0 0.0
    %246 = vmatpush1.msra.mxu0 0.0
    %247 = vmatprep.subr.mxu0 0.0
    %248 = vmatpush1.msra.mxu0 0.0
    %249 = vmatprep.subr.mxu0 0.0
    %250 = vmatpush1.msra.mxu0 0.0
    %251 = vmatprep.subr.mxu0 0.0
    %252 = vmatpush1.msra.mxu0 0.0
    %253 = vmatprep.subr.mxu0 0.0
    %254 = vmatpush1.msra.mxu0 0.0
    %255 = vmatprep.subr.mxu0 0.0
    %256 = vmatpush1.msra.mxu0 0.0
    %257 = vmatprep.subr.mxu0 0.0
    %258 = vmatpush1.msra.mxu0 0.0
    %259 = vmatprep.subr.mxu0 0.0
    %260 = vmatpush1.msra.mxu0 0.0
    %261 = vmatprep.subr.mxu0 0.0
    %262 = vmatpush1.msra.mxu0 0.0
    %263 = vmatprep.subr.mxu0 0.0
    %264 = vmatpush1.msra.mxu0 0.0
    %265 = vmatprep.mubr.f32.mxu0 0.0
    %266 = vmatmul.mubr.f32.gmra.mrb[0].mxu0 %v196
    %v267 = vpop.f32.mrb[0].mxu0
    %v268 = vadd.f32 %v192, %v267
    %v269 = vpop.f32.mrb[0].mxu0
    %270 = vmatprep.mubr.f32.mxu0 0.0
    %271 = vmatmul.mubr.f32.gmra.mrb[0].mxu0 %v199
    %v272 = vpop.f32.mrb[0].mxu0
    %v273 = vadd.f32 %v192, %v272
    %v274 = vpop.f32.mrb[0].mxu0
    %275 = vdwg.mxu0
    %v276 = vmax.f32 %v268, 0.0
    %v277 = vmax.f32 %v273, 0.0
    %v279 = vlaneseq
    %v280 = vshrl.u32 %v279, 7
    %v281 = vsub.s32 0, %v280
    %v282 = vrot.slane %v66, %v281
    %284 = vmatprep.subr.mxu0 0.0
    %285 = vmatpush1.msra.mxu0 %v50
    %286 = vmatprep.subr.mxu0 0.0
    %287 = vmatpush1.msra.mxu0 %v51
    %288 = vmatprep.subr.mxu0 0.0
    %289 = vmatpush1.msra.mxu0 %v52
    %290 = vmatprep.subr.mxu0 0.0
    %291 = vmatpush1.msra.mxu0 %v53
    %292 = vmatprep.subr.mxu0 0.0
    %293 = vmatpush1.msra.mxu0 %v54
    %294 = vmatprep.subr.mxu0 0.0
    %295 = vmatpush1.msra.mxu0 %v55
    %296 = vmatprep.subr.mxu0 0.0
    %297 = vmatpush1.msra.mxu0 %v56
    %298 = vmatprep.subr.mxu0 0.0
    %299 = vmatpush1.msra.mxu0 %v57
    %300 = vmatprep.subr.mxu0 0.0
    %301 = vmatpush1.msra.mxu0 %v58
    %302 = vmatprep.subr.mxu0 0.0
    %303 = vmatpush1.msra.mxu0 %v59
    %304 = vmatprep.subr.mxu0 0.0
    %305 = vmatpush1.msra.mxu0 %v60
    %306 = vmatprep.subr.mxu0 0.0
    %307 = vmatpush1.msra.mxu0 %v61
    %308 = vmatprep.subr.mxu0 0.0
    %309 = vmatpush1.msra.mxu0 %v62
    %310 = vmatprep.subr.mxu0 0.0
    %311 = vmatpush1.msra.mxu0 %v63
    %312 = vmatprep.subr.mxu0 0.0
    %313 = vmatpush1.msra.mxu0 %v64
    %314 = vmatprep.subr.mxu0 0.0
    %315 = vmatpush1.msra.mxu0 %v65
    %316 = vmatprep.subr.mxu0 0.0
    %317 = vmatpush1.msra.mxu0 0.0
    %318 = vmatprep.subr.mxu0 0.0
    %319 = vmatpush1.msra.mxu0 0.0
    %320 = vmatprep.subr.mxu0 0.0
    %321 = vmatpush1.msra.mxu0 0.0
    %322 = vmatprep.subr.mxu0 0.0
    %323 = vmatpush1.msra.mxu0 0.0
    %324 = vmatprep.subr.mxu0 0.0
    %325 = vmatpush1.msra.mxu0 0.0
    %326 = vmatprep.subr.mxu0 0.0
    %327 = vmatpush1.msra.mxu0 0.0
    %328 = vmatprep.subr.mxu0 0.0
    %329 = vmatpush1.msra.mxu0 0.0
    %330 = vmatprep.subr.mxu0 0.0
    %331 = vmatpush1.msra.mxu0 0.0
    %332 = vmatprep.subr.mxu0 0.0
    %333 = vmatpush1.msra.mxu0 0.0
    %334 = vmatprep.subr.mxu0 0.0
    %335 = vmatpush1.msra.mxu0 0.0
    %336 = vmatprep.subr.mxu0 0.0
    %337 = vmatpush1.msra.mxu0 0.0
    %338 = vmatprep.subr.mxu0 0.0
    %339 = vmatpush1.msra.mxu0 0.0
    %340 = vmatprep.subr.mxu0 0.0
    %341 = vmatpush1.msra.mxu0 0.0
    %342 = vmatprep.subr.mxu0 0.0
    %343 = vmatpush1.msra.mxu0 0.0
    %344 = vmatprep.subr.mxu0 0.0
    %345 = vmatpush1.msra.mxu0 0.0
    %346 = vmatprep.subr.mxu0 0.0
    %347 = vmatpush1.msra.mxu0 0.0
    %348 = vmatprep.mubr.f32.mxu0 0.0
    %349 = vmatmul.mubr.f32.gmra.mrb[0].mxu0 %v276
    %v350 = vpop.f32.mrb[0].mxu0
    %v351 = vadd.f32 %v282, %v350
    %v352 = vpop.f32.mrb[0].mxu0
    %353 = vmatprep.mubr.f32.mxu0 0.0
    %354 = vmatmul.mubr.f32.gmra.mrb[0].mxu0 %v277
    %v355 = vpop.f32.mrb[0].mxu0
    %v356 = vadd.f32 %v282, %v355
    %v357 = vpop.f32.mrb[0].mxu0
    %358 = vdwg.mxu0
    %359 = vst [vmem:[#allocation5] sm:$0x3] %v351
    %v360 = vadd.s32 %v68, 2
    %v361 = vadd.s32 %v69, 2
    %vm362 = vcmp.eq.s32.totalorder %v71, %v360
    %vm363 = vcmp.eq.s32.totalorder %v71, %v361
    %v364 = vsel %vm362, 1, 0
    %v365 = vsel %vm363, 1, 0
    %v366 = vcvt.s32.f32 %v364
    %v367 = vcvt.s32.f32 %v365
    %vm368 = vcmp.eq.s32.totalorder %v71, %v94
    %vm369 = vcmp.eq.s32.totalorder %v71, %v95
    %v370 = vsel %vm368, 1, 0
    %v371 = vsel %vm369, 1, 0
    %v372 = vcvt.s32.f32 %v370
    %v373 = vcvt.s32.f32 %v371
    %v374 = vsub.f32 %v366, %v372
    %v375 = vsub.f32 %v367, %v373
    %vm376 = vcmask 130048
    %v378 = vsel %vm376, %v374, 0
    %v381 = vsel %vm376, %v375, 0
    %383 = vmatprep.subr.mxu0 0.0
    %384 = vmatpush1.msra.mxu0 %v351
    %385 = vmatprep.subr.mxu0 0.0
    %386 = vmatpush1.msra.mxu0 %v356
    %387 = vmatprep.subr.mxu0 0.0
    %388 = vmatpush1.msra.mxu0 0.0
    %389 = vmatprep.subr.mxu0 0.0
    %390 = vmatpush1.msra.mxu0 0.0
    %391 = vmatprep.subr.mxu0 0.0
    %392 = vmatpush1.msra.mxu0 0.0
    %393 = vmatprep.subr.mxu0 0.0
    %394 = vmatpush1.msra.mxu0 0.0
    %395 = vmatprep.subr.mxu0 0.0
    %396 = vmatpush1.msra.mxu0 0.0
    %397 = vmatprep.subr.mxu0 0.0
    %398 = vmatpush1.msra.mxu0 0.0
    %399 = vmatprep.subr.mxu0 0.0
    %400 = vmatpush1.msra.mxu0 0.0
    %401 = vmatprep.subr.mxu0 0.0
    %402 = vmatpush1.msra.mxu0 0.0
    %403 = vmatprep.subr.mxu0 0.0
    %404 = vmatpush1.msra.mxu0 0.0
    %405 = vmatprep.subr.mxu0 0.0
    %406 = vmatpush1.msra.mxu0 0.0
    %407 = vmatprep.subr.mxu0 0.0
    %408 = vmatpush1.msra.mxu0 0.0
    %409 = vmatprep.subr.mxu0 0.0
    %410 = vmatpush1.msra.mxu0 0.0
    %411 = vmatprep.subr.mxu0 0.0
    %412 = vmatpush1.msra.mxu0 0.0
    %413 = vmatprep.subr.mxu0 0.0
    %414 = vmatpush1.msra.mxu0 0.0
    %415 = vmatprep.subr.mxu0 0.0
    %416 = vmatpush1.msra.mxu0 0.0
    %417 = vmatprep.subr.mxu0 0.0
    %418 = vmatpush1.msra.mxu0 0.0
    %419 = vmatprep.subr.mxu0 0.0
    %420 = vmatpush1.msra.mxu0 0.0
    %421 = vmatprep.subr.mxu0 0.0
    %422 = vmatpush1.msra.mxu0 0.0
    %423 = vmatprep.subr.mxu0 0.0
    %424 = vmatpush1.msra.mxu0 0.0
    %425 = vmatprep.subr.mxu0 0.0
    %426 = vmatpush1.msra.mxu0 0.0
    %427 = vmatprep.subr.mxu0 0.0
    %428 = vmatpush1.msra.mxu0 0.0
    %429 = vmatprep.subr.mxu0 0.0
    %430 = vmatpush1.msra.mxu0 0.0
    %431 = vmatprep.subr.mxu0 0.0
    %432 = vmatpush1.msra.mxu0 0.0
    %433 = vmatprep.subr.mxu0 0.0
    %434 = vmatpush1.msra.mxu0 0.0
    %435 = vmatprep.subr.mxu0 0.0
    %436 = vmatpush1.msra.mxu0 0.0
    %437 = vmatprep.subr.mxu0 0.0
    %438 = vmatpush1.msra.mxu0 0.0
    %439 = vmatprep.subr.mxu0 0.0
    %440 = vmatpush1.msra.mxu0 0.0
    %441 = vmatprep.subr.mxu0 0.0
    %442 = vmatpush1.msra.mxu0 0.0
    %443 = vmatprep.subr.mxu0 0.0
    %444 = vmatpush1.msra.mxu0 0.0
    %445 = vmatprep.subr.mxu0 0.0
    %446 = vmatpush1.msra.mxu0 0.0
    %447 = vmatprep.mubr.f32.mxu0 0.0
    %448 = vmatmul.mubr.f32.gmra.mrb[0].mxu0 %v378
    %v449 = vpop.f32.mrb[0].mxu0
    %v450 = vadd.f32 0.0, %v449
    %v451 = vpop.f32.mrb[0].mxu0
    %452 = vmatprep.mubr.f32.mxu0 0.0
    %453 = vmatmul.mubr.f32.gmra.mrb[0].mxu0 %v381
    %v454 = vpop.f32.mrb[0].mxu0
    %v455 = vadd.f32 0.0, %v454
    %v456 = vpop.f32.mrb[0].mxu0
    %457 = vdwg.mxu0
    %458 = vst [vmem:[%s7] sm:$0xff] %v450
    %459 = vst [vmem:[%s7 + $0x8] sm:$0x3f] %v455
    %v460 = vadd.f32 %v450, 1e-08
    %v461 = vadd.f32 %v455, 1e-08
    %vm462 = vcmp.lt.s32.totalorder %v71, 16
    %v463 = vmul.f32 %v460, %v460
    %v464 = vmul.f32 %v461, %v461
    %v465 = vsel %vm462, %v463, 0.0
    %v466 = vsel %vm462, %v464, 0.0
    %vm467 = vcmask 1045504
    %v468 = vsel %vm467, %v466, 0.0
    %v469 = vadd.f32 %v465, %v468
    %470 = vadd.xlane.f32.xlu0 %v469
    %v471 = vpop.xlane.xlu0 %470
    %v472 = vrot.slane %v471, 4
    %v473 = vadd.f32 %v471, %v472
    %v474 = vrot.slane %v473, 2
    %v475 = vadd.f32 %v473, %v474
    %v476 = vrot.slane %v475, 1
    %v477 = vadd.f32 %v475, %v476
    %s478 = vtos %v477
    %v479 = vstv %s478
    %v480 = vmul.f32 %v479, 0.004464286
    %v481 = vrsqrt.pop %v480
    %v482 = vmul.f32 %v480, %v481
    %vm483 = vcmp.eq.f32.partialorder %v480, inf
    %v484 = vsel %vm483, %v480, %v482
    %vm485 = vcmp.eq.f32.partialorder %v480, 0.0
    %v486 = vand.u32 %v480, 2147483648
    %v487 = vsel %vm485, %v486, %v484
    %vm488 = vcmask 0
    %489 = vst.msk [vmem:[#allocation6] sm:$0x1] %vm488, %v487
    // Predicated region
    $region30: #{stsm_forward.1} parent=1 // pred_check
      _
    $region31: #{stsm_forward.1} parent=1 // pred_check_branch
      %491 = sbr.rel (0) target = $region33
    $region32: #{stsm_forward.1} parent=1 // pred_region
      %s493 = ssub.s32 32, 32
      %494 = vsyncadd [#allocation4], %s493
      %s496 = sshll.u32 [#allocation5], 4
      %s497 = int_to_ptr.vmem [resolvable:$true] %s496
      %499 = dma.vmem_to_hbm [thread:$0]  %s497, 32, %s6, [#allocation4]
    $region33: #{stsm_forward.1} parent=1 // pred_fallthru
      _
    // Predicated region
    $region34: #{stsm_forward.1} parent=1 // pred_check
      _
    $region35: #{stsm_forward.1} parent=1 // pred_check_branch
      %501 = sbr.rel (0) target = $region37
    $region36: #{stsm_forward.1} parent=1 // pred_region
      _
    $region37: #{stsm_forward.1} parent=1 // pred_fallthru
      _
    // Predicated region
    $region38: #{stsm_forward.1} parent=1 // pred_check
      _
    $region39: #{stsm_forward.1} parent=1 // pred_check_branch
      %503 = sbr.rel (0) target = $region41
    $region40: #{stsm_forward.1} parent=1 // pred_region
      %s505 = ssub.s32 16, 16
      %506 = vsyncadd [#allocation7], %s505
      %s508 = sshll.u32 [#allocation6], 4
      %s509 = int_to_ptr.vmem [resolvable:$true] %s508
      %511 = dma.vmem_to_hbm [thread:$0]  %s509, 16, %s8, [#allocation7]
    $region41: #{stsm_forward.1} parent=1 // pred_fallthru
      _
    // Predicated region
    $region42: #{stsm_forward.1} parent=1 // pred_check
      _
    $region43: #{stsm_forward.1} parent=1 // pred_check_branch
      %513 = sbr.rel (0) target = $region45
    $region44: #{stsm_forward.1} parent=1 // pred_region
      %514 = dma.done [#allocation4], 32
    $region45: #{stsm_forward.1} parent=1 // pred_fallthru
      _
    // Predicated region
    $region46: #{stsm_forward.1} parent=1 // pred_check
      _
    $region47: #{stsm_forward.1} parent=1 // pred_check_branch
      %516 = sbr.rel (0) target = $region49
    $region48: #{stsm_forward.1} parent=1 // pred_region
      _
    $region49: #{stsm_forward.1} parent=1 // pred_fallthru
      _
    // Predicated region
    $region50: #{stsm_forward.1} parent=1 // pred_check
      _
    $region51: #{stsm_forward.1} parent=1 // pred_check_branch
      %518 = sbr.rel (0) target = $region53
    $region52: #{stsm_forward.1} parent=1 // pred_region
      %519 = dma.done [#allocation7], 16
    $region53: #{stsm_forward.1} parent=1 // pred_fallthru
      _
    %520 = vsyncpa [#allocation3], 1
    %521 = vsyncpa [#allocation4], 1
    %522 = vsyncpa [#allocation7], 1

</llo_original>
